<compile_context>
chip_gen: v5e
topology: v5e:2x2
jax: 0.10.0
libtpu: 0.0.40
codegen_flags: <defaults>
</compile_context>

<pallas_src>
import math
import jax
import jax.numpy as jnp
from jax.experimental import pallas as pl
from jax.experimental.pallas import tpu as pltpu

MIN_STD = 1e-5


def cond_dist_kernel(x_ref, w1_ref, b1_ref, w2_ref, b2_ref, out_ref):
    # Hidden layer: [TM, K] x [K, H] on the MXU (f32 accumulation), bias + ReLU on the VPU.
    h = jnp.dot(x_ref[...], w1_ref[...], preferred_element_type=jnp.float32)
    h = jnp.maximum(h + b1_ref[...], 0.0)               # b1 is (1, H), broadcasts over batch rows

    # Fused output layer: one [TM, H] x [H, 2*out_dim] dot; columns are already laid out as
    # [loc_0..loc_{z-1} | log_var_0..log_var_{z-1}] (de-interleaved at parameter-prep time).
    suff = jnp.dot(h, w2_ref[...], preferred_element_type=jnp.float32) + b2_ref[...]

    out_dim = suff.shape[-1] // 2
    loc = suff[:, :out_dim]
    scale = jax.nn.softplus(suff[:, out_dim:]) + MIN_STD  # DiagGaussian.preprocess_suff_params

    # Single lane-dense output slab: [TM, 2*out_dim] = (loc | scale).
    out_ref[...] = jnp.concatenate([loc, scale], axis=-1).astype(out_ref.dtype)


def prepare_params(params):
    """One-time parameter prep (outside the per-step hot path).

    De-interleaves the 'b (z p)' column ordering of the second linear layer (0::2 -> loc,
    1::2 -> log_var) and fuses the two column blocks into one [H, 2*out_dim] weight so the
    kernel needs a single second-layer matmul.  Biases become 2-D (1, N) lane-major tiles.
    """
    w1, b1, w2, b2 = params["w1"], params["b1"], params["w2"], params["b2"]
    w2_fused = jnp.concatenate([w2[:, 0::2], w2[:, 1::2]], axis=1)   # [H, 2*out_dim]
    b2_fused = jnp.concatenate([b2[0::2], b2[1::2]], axis=0)         # [2*out_dim]
    return {
        "w1": w1,
        "b1_2d": b1.reshape(1, -1).astype(jnp.float32),
        "w2_fused": w2_fused,
        "b2_2d": b2_fused.reshape(1, -1).astype(jnp.float32),
    }


def cond_dist_forward(x, prepared, *, block_b=256, compute_dtype=jnp.float32):
    """x: [B, C, H, W].  Returns (loc, scale), each [B, out_dim] float32."""
    B = x.shape[0]
    x_flat = x.reshape(B, -1).astype(compute_dtype)                  # glue: flatten in_shape
    in_dim = x_flat.shape[1]

    w1 = prepared["w1"].astype(compute_dtype)
    b1 = prepared["b1_2d"]
    w2 = prepared["w2_fused"].astype(compute_dtype)
    b2 = prepared["b2_2d"]
    hidden = w1.shape[1]
    two_out = w2.shape[1]
    out_dim = two_out // 2

    # Batch tile: multiple of 8 sublanes, capped at block_b; pad the batch so the grid divides evenly.
    tm = min(block_b, max(8, ((B + 7) // 8) * 8))
    b_pad = pl.cdiv(B, tm) * tm
    if b_pad != B:
        x_flat = jnp.pad(x_flat, ((0, b_pad - B), (0, 0)))
    grid = (b_pad // tm,)

    bytes_per = jnp.dtype(compute_dtype).itemsize
    cost = pl.CostEstimate(
        flops=2 * b_pad * in_dim * hidden + 2 * b_pad * hidden * two_out,
        transcendentals=b_pad * out_dim,                             # softplus exp per element
        bytes_accessed=(b_pad * in_dim * bytes_per
                        + (in_dim * hidden + hidden * two_out) * bytes_per
                        + (hidden + two_out) * 4
                        + b_pad * two_out * 4),
    )

    out = pl.pallas_call(
        cond_dist_kernel,
        out_shape=jax.ShapeDtypeStruct((b_pad, two_out), jnp.float32),
        grid_spec=pltpu.PrefetchScalarGridSpec(
            num_scalar_prefetch=0,
            grid=grid,
            in_specs=[
                pl.BlockSpec((tm, in_dim), lambda i: (i, 0)),        # x: tiled over batch, pipelined
                pl.BlockSpec((in_dim, hidden), lambda i: (0, 0)),    # w1: VMEM-resident across steps
                pl.BlockSpec((1, hidden), lambda i: (0, 0)),         # b1: resident
                pl.BlockSpec((hidden, two_out), lambda i: (0, 0)),   # fused w2: resident
                pl.BlockSpec((1, two_out), lambda i: (0, 0)),        # fused b2: resident
            ],
            out_specs=pl.BlockSpec((tm, two_out), lambda i: (i, 0)),
        ),
        compiler_params=pltpu.CompilerParams(
            dimension_semantics=("parallel",),                       # dual-TC sharding on v7x
        ),
        cost_estimate=cost,
    )(x_flat, w1, b1, w2, b2)

    loc = out[:B, :out_dim]
    scale = out[:B, out_dim:]
    return loc, scale


def init_params(key, in_dim, hidden, out_dim):
    """Deterministic Kaiming-uniform-style init (shapes match the PyTorch module)."""
    k1, k2, k3, k4 = jax.random.split(key, 4)
    lim1 = 1.0 / math.sqrt(in_dim)
    lim2 = 1.0 / math.sqrt(hidden)
    return {
        "w1": jax.random.uniform(k1, (in_dim, hidden), jnp.float32, -lim1, lim1),
        "b1": jax.random.uniform(k2, (hidden,), jnp.float32, -lim1, lim1),
        # second linear outputs out_dim * n_param (n_param = 2 for DiagGaussian)
        "w2": jax.random.uniform(k3, (hidden, out_dim * 2), jnp.float32, -lim2, lim2),
        "b2": jax.random.uniform(k4, (out_dim * 2,), jnp.float32, -lim2, lim2),
    }


def reference_forward(x, params):
    """Pure-JAX reference of the same forward pass (for a sanity check)."""
    B = x.shape[0]
    xf = x.reshape(B, -1)
    h = jnp.maximum(xf @ params["w1"] + params["b1"], 0.0)
    suff = h @ params["w2"] + params["b2"]                           # [B, out_dim * 2]
    suff = suff.reshape(B, -1, 2)                                    # 'b (z p) -> b z p'
    loc, log_var = suff[..., 0], suff[..., 1]
    scale = jax.nn.softplus(log_var) + MIN_STD
    return loc, scale


if __name__ == "__main__":
    key = jax.random.PRNGKey(0)
    k_x, k_p = jax.random.split(key)

    # Small shapes consistent with the module: in_shape = (4, 16, 16), out_dim = 8
    B, C, H, W = 2, 4, 16, 16
    hidden = 32
    out_dim = 8

    x = jax.random.normal(k_x, (B, C, H, W), jnp.float32)
    params = init_params(k_p, C * H * W, hidden, out_dim)
    prepared = prepare_params(params)                                # one-time, outside the hot path

    loc, scale = cond_dist_forward(x, prepared)
    loc, scale = jax.block_until_ready((loc, scale))

    loc_ref, scale_ref = reference_forward(x, params)
    assert loc.shape == (B, out_dim) and scale.shape == (B, out_dim)
    assert jnp.allclose(loc, loc_ref, atol=1e-5, rtol=1e-5)
    assert jnp.allclose(scale, scale_ref, atol=1e-5, rtol=1e-5)
    assert bool(jnp.all(scale > 0.0))

    print("KERNEL_OK")
</pallas_src>

<mosaic_0001>
module attributes {stable_mosaic.version = 11 : i64} {
  func.func @cond_dist_kernel(%arg0: i32, %arg1: memref<8x1024xf32, #tpu.memory_space<vmem>>, %arg2: memref<1024x32xf32, #tpu.memory_space<vmem>>, %arg3: memref<1x32xf32, #tpu.memory_space<vmem>>, %arg4: memref<32x16xf32, #tpu.memory_space<vmem>>, %arg5: memref<1x16xf32, #tpu.memory_space<vmem>>, %arg6: memref<8x16xf32, #tpu.memory_space<vmem>>) attributes {dimension_semantics = [#tpu.dimension_semantics<parallel>], iteration_bounds = array<i64: 1>, scalar_prefetch = 0 : i64, scratch_operands = 0 : i64, tpu.core_type = #tpu.core_type<tc>, window_params = [{transform_indices = @transform_0, window_bounds = array<i64: 8, 1024>}, {pipeline_mode = #tpu.pipeline_mode<synchronous>, transform_indices = @transform_1, window_bounds = array<i64: 1024, 32>}, {pipeline_mode = #tpu.pipeline_mode<synchronous>, transform_indices = @transform_2, window_bounds = array<i64: 1, 32>}, {pipeline_mode = #tpu.pipeline_mode<synchronous>, transform_indices = @transform_3, window_bounds = array<i64: 32, 16>}, {pipeline_mode = #tpu.pipeline_mode<synchronous>, transform_indices = @transform_4, window_bounds = array<i64: 1, 16>}, {transform_indices = @transform_5, window_bounds = array<i64: 8, 16>}]} {
    %c0 = arith.constant 0 : index
    %c0_0 = arith.constant 0 : index
    %0 = vector.load %arg1[%c0, %c0_0] : memref<8x1024xf32, #tpu.memory_space<vmem>>, vector<8x1024xf32>
    %c0_1 = arith.constant 0 : index
    %c0_2 = arith.constant 0 : index
    %1 = vector.load %arg2[%c0_1, %c0_2] : memref<1024x32xf32, #tpu.memory_space<vmem>>, vector<1024x32xf32>
    %cst = arith.constant dense<0.000000e+00> : vector<8x32xf32>
    %2 = tpu.matmul %0, %1, %cst {dimension_numbers = #tpu.dot_dimension_numbers<[1], [0], [0], [1], [0, 0, 1, 1], [], []>} : vector<8x1024xf32>, vector<1024x32xf32>, vector<8x32xf32> -> vector<8x32xf32>
    %c0_3 = arith.constant 0 : index
    %c0_4 = arith.constant 0 : index
    %3 = vector.load %arg3[%c0_3, %c0_4] : memref<1x32xf32, #tpu.memory_space<vmem>>, vector<1x32xf32>
    %4 = vector.broadcast %3 : vector<1x32xf32> to vector<8x32xf32>
    %5 = arith.addf %2, %4 : vector<8x32xf32>
    %cst_5 = arith.constant 0.000000e+00 : f32
    %6 = vector.broadcast %cst_5 : f32 to vector<8x32xf32>
    %7 = arith.maximumf %5, %6 : vector<8x32xf32>
    %c0_6 = arith.constant 0 : index
    %c0_7 = arith.constant 0 : index
    %8 = vector.load %arg4[%c0_6, %c0_7] : memref<32x16xf32, #tpu.memory_space<vmem>>, vector<32x16xf32>
    %cst_8 = arith.constant dense<0.000000e+00> : vector<8x16xf32>
    %9 = tpu.matmul %7, %8, %cst_8 {dimension_numbers = #tpu.dot_dimension_numbers<[1], [0], [0], [1], [0, 0, 1, 1], [], []>} : vector<8x32xf32>, vector<32x16xf32>, vector<8x16xf32> -> vector<8x16xf32>
    %c0_9 = arith.constant 0 : index
    %c0_10 = arith.constant 0 : index
    %10 = vector.load %arg5[%c0_9, %c0_10] : memref<1x16xf32, #tpu.memory_space<vmem>>, vector<1x16xf32>
    %11 = vector.broadcast %10 : vector<1x16xf32> to vector<8x16xf32>
    %12 = arith.addf %9, %11 : vector<8x16xf32>
    %13 = vector.extract_strided_slice %12 {offsets = [0, 0], sizes = [8, 8], strides = [1, 1]} : vector<8x16xf32> to vector<8x8xf32>
    %14 = vector.extract_strided_slice %12 {offsets = [0, 8], sizes = [8, 8], strides = [1, 1]} : vector<8x16xf32> to vector<8x8xf32>
    %cst_11 = arith.constant 0.000000e+00 : f32
    %15 = vector.broadcast %cst_11 : f32 to vector<8x8xf32>
    %16 = arith.maximumf %14, %15 : vector<8x8xf32>
    %17 = vector.broadcast %cst_11 : f32 to vector<8x8xf32>
    %18 = arith.subf %14, %17 : vector<8x8xf32>
    %19 = arith.cmpf one, %18, %18 : vector<8x8xf32>
    %20 = vector.broadcast %cst_11 : f32 to vector<8x8xf32>
    %21 = arith.addf %14, %20 : vector<8x8xf32>
    %22 = math.absf %18 : vector<8x8xf32>
    %cst_12 = arith.constant 0.000000e+00 : f32
    %23 = vector.broadcast %cst_12 : f32 to vector<8x8xf32>
    %24 = arith.subf %23, %22 : vector<8x8xf32>
    %25 = math.exp %24 : vector<8x8xf32>
    %26 = math.log1p %25 : vector<8x8xf32>
    %27 = arith.addf %16, %26 : vector<8x8xf32>
    %28 = arith.select %19, %21, %27 : vector<8x8xi1>, vector<8x8xf32>
    %cst_13 = arith.constant 9.99999974E-6 : f32
    %29 = vector.broadcast %cst_13 : f32 to vector<8x8xf32>
    %30 = arith.addf %28, %29 : vector<8x8xf32>
    %31 = tpu.concatenate %13, %30 in 1 : vector<8x8xf32>, vector<8x8xf32> -> vector<8x16xf32>
    %c0_14 = arith.constant 0 : index
    %c0_15 = arith.constant 0 : index
    %32 = vector.load %arg6[%c0_14, %c0_15] : memref<8x16xf32, #tpu.memory_space<vmem>>, vector<8x16xf32>
    tpu.vector_store %arg6[%c0_14, %c0_15], %31 {strides = array<i32>} : memref<8x16xf32, #tpu.memory_space<vmem>>, vector<8x16xf32>,
    return
  }
  func.func @transform_0(%arg0: i32) -> (i32, i32) {
    %c0_i32 = arith.constant 0 : i32
    %c0_i32_0 = arith.constant 0 : i32
    return %arg0, %c0_i32 : i32, i32
  }
  func.func @transform_1(%arg0: i32) -> (i32, i32) {
    %c0_i32 = arith.constant 0 : i32
    %c0_i32_0 = arith.constant 0 : i32
    %c0_i32_1 = arith.constant 0 : i32
    return %c0_i32, %c0_i32_0 : i32, i32
  }
  func.func @transform_2(%arg0: i32) -> (i32, i32) {
    %c0_i32 = arith.constant 0 : i32
    %c0_i32_0 = arith.constant 0 : i32
    %c0_i32_1 = arith.constant 0 : i32
    return %c0_i32, %c0_i32_0 : i32, i32
  }
  func.func @transform_3(%arg0: i32) -> (i32, i32) {
    %c0_i32 = arith.constant 0 : i32
    %c0_i32_0 = arith.constant 0 : i32
    %c0_i32_1 = arith.constant 0 : i32
    return %c0_i32, %c0_i32_0 : i32, i32
  }
  func.func @transform_4(%arg0: i32) -> (i32, i32) {
    %c0_i32 = arith.constant 0 : i32
    %c0_i32_0 = arith.constant 0 : i32
    %c0_i32_1 = arith.constant 0 : i32
    return %c0_i32, %c0_i32_0 : i32, i32
  }
  func.func @transform_5(%arg0: i32) -> (i32, i32) {
    %c0_i32 = arith.constant 0 : i32
    %c0_i32_0 = arith.constant 0 : i32
    return %arg0, %c0_i32 : i32, i32
  }
}

</mosaic_0001>

<llo_original>
// kernel: tpu_custom_call.1
$region0: #{tpu_custom_call.1}
  #allocation0 [shape = 'u32[]', space=smem, size = 0x4, offset = 0x4, fixed_abs, tag = 'smem constant byte address 0x4 - core index']
  #allocation1 [shape = 'u32[72,128]{1,0:T(1,128)}', space=vmem, size = 0x9000, scoped, tag = 'internal scratch']
  %s0 = inlined_call_operand.vmem [shape: f32[8,1024], index: 0, kind: input, shape index: {}]
  %s1 = inlined_call_operand.vmem [shape: f32[1024,32], index: 1, kind: input, shape index: {}]
  %s2 = inlined_call_operand.vmem [shape: f32[1,32], index: 2, kind: input, shape index: {}]
  %s3 = inlined_call_operand.vmem [shape: f32[32,16], index: 3, kind: input, shape index: {}]
  %s4 = inlined_call_operand.vmem [shape: f32[1,16], index: 4, kind: input, shape index: {}]
  %s5 = inlined_call_operand.hbm [shape: f32[8,16], index: 5, kind: output, shape index: {}]
  %s6 = sld [smem:[#allocation0]]
  $region30: #{tpu_custom_call.1} parent=0
    _
  %s8 = ssub.s32 1, %s6
  %s9 = scalar_select 0, %s8, %s6
  $region1: #{tpu_custom_call.1} parent=0
    #allocation2 [shape = 'u8[4096]{0}', space=vmem, size = 0x1000, scoped, tag = 'output window, operand 0, single buffered']
    #allocation3 [shape = 's32[1]{0}', space=sflag, size = 0x4, scoped, tag = 'scoped memory for tpu_custom_call.1']
    %10 = vsyncpa [#allocation3], 0
    // Predicated region
    $region2: #{tpu_custom_call.1} parent=1 // pred_check
      _
    $region3: #{tpu_custom_call.1} parent=1 // pred_check_branch
      %12 = sbr.rel (0) target = $region5
    $region4: #{tpu_custom_call.1} parent=1 // pred_region
      _
    $region5: #{tpu_custom_call.1} parent=1 // pred_fallthru
      _
    // Predicated region
    $region6: #{tpu_custom_call.1} parent=1 // pred_check
      _
    $region7: #{tpu_custom_call.1} parent=1 // pred_check_branch
      %14 = sbr.rel (0) target = $region9
    $region8: #{tpu_custom_call.1} parent=1 // pred_region
      _
    $region9: #{tpu_custom_call.1} parent=1 // pred_fallthru
      _
    // Predicated region
    $region10: #{tpu_custom_call.1} parent=1 // pred_check
      _
    $region11: #{tpu_custom_call.1} parent=1 // pred_check_branch
      %16 = sbr.rel (0) target = $region13
    $region12: #{tpu_custom_call.1} parent=1 // pred_region
      _
    $region13: #{tpu_custom_call.1} parent=1 // pred_fallthru
      _
    // Predicated region
    $region14: #{tpu_custom_call.1} parent=1 // pred_check
      _
    $region15: #{tpu_custom_call.1} parent=1 // pred_check_branch
      %18 = sbr.rel (0) target = $region17
    $region16: #{tpu_custom_call.1} parent=1 // pred_region
      _
    $region17: #{tpu_custom_call.1} parent=1 // pred_fallthru
      _
    // Predicated region
    $region18: #{tpu_custom_call.1} parent=1 // pred_check
      _
    $region19: #{tpu_custom_call.1} parent=1 // pred_check_branch
      %20 = sbr.rel (0) target = $region21
    $region20: #{tpu_custom_call.1} parent=1 // pred_region
      _
    $region21: #{tpu_custom_call.1} parent=1 // pred_fallthru
      _
    %v21 = vld [vmem:[%s0] sm:$0xff]
    %v22 = vld [vmem:[%s0 + $0x8] sm:$0xff]
    %v23 = vld [vmem:[%s0 + $0x10] sm:$0xff]
    %v24 = vld [vmem:[%s0 + $0x18] sm:$0xff]
    %v25 = vld [vmem:[%s0 + $0x20] sm:$0xff]
    %v26 = vld [vmem:[%s0 + $0x28] sm:$0xff]
    %v27 = vld [vmem:[%s0 + $0x30] sm:$0xff]
    %v28 = vld [vmem:[%s0 + $0x38] sm:$0xff]
    %v29 = vld [vmem:[%s1] sm:$0xff]
    %v30 = vld [vmem:[%s1 + $0x8] sm:$0xff]
    %v31 = vld [vmem:[%s1 + $0x10] sm:$0xff]
    %v32 = vld [vmem:[%s1 + $0x18] sm:$0xff]
    %v33 = vld [vmem:[%s1 + $0x20] sm:$0xff]
    %v34 = vld [vmem:[%s1 + $0x28] sm:$0xff]
    %v35 = vld [vmem:[%s1 + $0x30] sm:$0xff]
    %v36 = vld [vmem:[%s1 + $0x38] sm:$0xff]
    %v37 = vld [vmem:[%s1 + $0x40] sm:$0xff]
    %v38 = vld [vmem:[%s1 + $0x48] sm:$0xff]
    %v39 = vld [vmem:[%s1 + $0x50] sm:$0xff]
    %v40 = vld [vmem:[%s1 + $0x58] sm:$0xff]
    %v41 = vld [vmem:[%s1 + $0x60] sm:$0xff]
    %v42 = vld [vmem:[%s1 + $0x68] sm:$0xff]
    %v43 = vld [vmem:[%s1 + $0x70] sm:$0xff]
    %v44 = vld [vmem:[%s1 + $0x78] sm:$0xff]
    %v45 = vld [vmem:[%s1 + $0x80] sm:$0xff]
    %v46 = vld [vmem:[%s1 + $0x88] sm:$0xff]
    %v47 = vld [vmem:[%s1 + $0x90] sm:$0xff]
    %v48 = vld [vmem:[%s1 + $0x98] sm:$0xff]
    %v49 = vld [vmem:[%s1 + $0xa0] sm:$0xff]
    %v50 = vld [vmem:[%s1 + $0xa8] sm:$0xff]
    %v51 = vld [vmem:[%s1 + $0xb0] sm:$0xff]
    %v52 = vld [vmem:[%s1 + $0xb8] sm:$0xff]
    %v53 = vld [vmem:[%s1 + $0xc0] sm:$0xff]
    %v54 = vld [vmem:[%s1 + $0xc8] sm:$0xff]
    %v55 = vld [vmem:[%s1 + $0xd0] sm:$0xff]
    %v56 = vld [vmem:[%s1 + $0xd8] sm:$0xff]
    %v57 = vld [vmem:[%s1 + $0xe0] sm:$0xff]
    %v58 = vld [vmem:[%s1 + $0xe8] sm:$0xff]
    %v59 = vld [vmem:[%s1 + $0xf0] sm:$0xff]
    %v60 = vld [vmem:[%s1 + $0xf8] sm:$0xff]
    %v61 = vld [vmem:[%s1 + $0x100] sm:$0xff]
    %v62 = vld [vmem:[%s1 + $0x108] sm:$0xff]
    %v63 = vld [vmem:[%s1 + $0x110] sm:$0xff]
    %v64 = vld [vmem:[%s1 + $0x118] sm:$0xff]
    %v65 = vld [vmem:[%s1 + $0x120] sm:$0xff]
    %v66 = vld [vmem:[%s1 + $0x128] sm:$0xff]
    %v67 = vld [vmem:[%s1 + $0x130] sm:$0xff]
    %v68 = vld [vmem:[%s1 + $0x138] sm:$0xff]
    %v69 = vld [vmem:[%s1 + $0x140] sm:$0xff]
    %v70 = vld [vmem:[%s1 + $0x148] sm:$0xff]
    %v71 = vld [vmem:[%s1 + $0x150] sm:$0xff]
    %v72 = vld [vmem:[%s1 + $0x158] sm:$0xff]
    %v73 = vld [vmem:[%s1 + $0x160] sm:$0xff]
    %v74 = vld [vmem:[%s1 + $0x168] sm:$0xff]
    %v75 = vld [vmem:[%s1 + $0x170] sm:$0xff]
    %v76 = vld [vmem:[%s1 + $0x178] sm:$0xff]
    %v77 = vld [vmem:[%s1 + $0x180] sm:$0xff]
    %v78 = vld [vmem:[%s1 + $0x188] sm:$0xff]
    %v79 = vld [vmem:[%s1 + $0x190] sm:$0xff]
    %v80 = vld [vmem:[%s1 + $0x198] sm:$0xff]
    %v81 = vld [vmem:[%s1 + $0x1a0] sm:$0xff]
    %v82 = vld [vmem:[%s1 + $0x1a8] sm:$0xff]
    %v83 = vld [vmem:[%s1 + $0x1b0] sm:$0xff]
    %v84 = vld [vmem:[%s1 + $0x1b8] sm:$0xff]
    %v85 = vld [vmem:[%s1 + $0x1c0] sm:$0xff]
    %v86 = vld [vmem:[%s1 + $0x1c8] sm:$0xff]
    %v87 = vld [vmem:[%s1 + $0x1d0] sm:$0xff]
    %v88 = vld [vmem:[%s1 + $0x1d8] sm:$0xff]
    %v89 = vld [vmem:[%s1 + $0x1e0] sm:$0xff]
    %v90 = vld [vmem:[%s1 + $0x1e8] sm:$0xff]
    %v91 = vld [vmem:[%s1 + $0x1f0] sm:$0xff]
    %v92 = vld [vmem:[%s1 + $0x1f8] sm:$0xff]
    %v93 = vld [vmem:[%s1 + $0x200] sm:$0xff]
    %v94 = vld [vmem:[%s1 + $0x208] sm:$0xff]
    %v95 = vld [vmem:[%s1 + $0x210] sm:$0xff]
    %v96 = vld [vmem:[%s1 + $0x218] sm:$0xff]
    %v97 = vld [vmem:[%s1 + $0x220] sm:$0xff]
    %v98 = vld [vmem:[%s1 + $0x228] sm:$0xff]
    %v99 = vld [vmem:[%s1 + $0x230] sm:$0xff]
    %v100 = vld [vmem:[%s1 + $0x238] sm:$0xff]
    %v101 = vld [vmem:[%s1 + $0x240] sm:$0xff]
    %v102 = vld [vmem:[%s1 + $0x248] sm:$0xff]
    %v103 = vld [vmem:[%s1 + $0x250] sm:$0xff]
    %v104 = vld [vmem:[%s1 + $0x258] sm:$0xff]
    %v105 = vld [vmem:[%s1 + $0x260] sm:$0xff]
    %v106 = vld [vmem:[%s1 + $0x268] sm:$0xff]
    %v107 = vld [vmem:[%s1 + $0x270] sm:$0xff]
    %v108 = vld [vmem:[%s1 + $0x278] sm:$0xff]
    %v109 = vld [vmem:[%s1 + $0x280] sm:$0xff]
    %v110 = vld [vmem:[%s1 + $0x288] sm:$0xff]
    %v111 = vld [vmem:[%s1 + $0x290] sm:$0xff]
    %v112 = vld [vmem:[%s1 + $0x298] sm:$0xff]
    %v113 = vld [vmem:[%s1 + $0x2a0] sm:$0xff]
    %v114 = vld [vmem:[%s1 + $0x2a8] sm:$0xff]
    %v115 = vld [vmem:[%s1 + $0x2b0] sm:$0xff]
    %v116 = vld [vmem:[%s1 + $0x2b8] sm:$0xff]
    %v117 = vld [vmem:[%s1 + $0x2c0] sm:$0xff]
    %v118 = vld [vmem:[%s1 + $0x2c8] sm:$0xff]
    %v119 = vld [vmem:[%s1 + $0x2d0] sm:$0xff]
    %v120 = vld [vmem:[%s1 + $0x2d8] sm:$0xff]
    %v121 = vld [vmem:[%s1 + $0x2e0] sm:$0xff]
    %v122 = vld [vmem:[%s1 + $0x2e8] sm:$0xff]
    %v123 = vld [vmem:[%s1 + $0x2f0] sm:$0xff]
    %v124 = vld [vmem:[%s1 + $0x2f8] sm:$0xff]
    %v125 = vld [vmem:[%s1 + $0x300] sm:$0xff]
    %v126 = vld [vmem:[%s1 + $0x308] sm:$0xff]
    %v127 = vld [vmem:[%s1 + $0x310] sm:$0xff]
    %v128 = vld [vmem:[%s1 + $0x318] sm:$0xff]
    %v129 = vld [vmem:[%s1 + $0x320] sm:$0xff]
    %v130 = vld [vmem:[%s1 + $0x328] sm:$0xff]
    %v131 = vld [vmem:[%s1 + $0x330] sm:$0xff]
    %v132 = vld [vmem:[%s1 + $0x338] sm:$0xff]
    %v133 = vld [vmem:[%s1 + $0x340] sm:$0xff]
    %v134 = vld [vmem:[%s1 + $0x348] sm:$0xff]
    %v135 = vld [vmem:[%s1 + $0x350] sm:$0xff]
    %v136 = vld [vmem:[%s1 + $0x358] sm:$0xff]
    %v137 = vld [vmem:[%s1 + $0x360] sm:$0xff]
    %v138 = vld [vmem:[%s1 + $0x368] sm:$0xff]
    %v139 = vld [vmem:[%s1 + $0x370] sm:$0xff]
    %v140 = vld [vmem:[%s1 + $0x378] sm:$0xff]
    %v141 = vld [vmem:[%s1 + $0x380] sm:$0xff]
    %v142 = vld [vmem:[%s1 + $0x388] sm:$0xff]
    %v143 = vld [vmem:[%s1 + $0x390] sm:$0xff]
    %v144 = vld [vmem:[%s1 + $0x398] sm:$0xff]
    %v145 = vld [vmem:[%s1 + $0x3a0] sm:$0xff]
    %v146 = vld [vmem:[%s1 + $0x3a8] sm:$0xff]
    %v147 = vld [vmem:[%s1 + $0x3b0] sm:$0xff]
    %v148 = vld [vmem:[%s1 + $0x3b8] sm:$0xff]
    %v149 = vld [vmem:[%s1 + $0x3c0] sm:$0xff]
    %v150 = vld [vmem:[%s1 + $0x3c8] sm:$0xff]
    %v151 = vld [vmem:[%s1 + $0x3d0] sm:$0xff]
    %v152 = vld [vmem:[%s1 + $0x3d8] sm:$0xff]
    %v153 = vld [vmem:[%s1 + $0x3e0] sm:$0xff]
    %v154 = vld [vmem:[%s1 + $0x3e8] sm:$0xff]
    %v155 = vld [vmem:[%s1 + $0x3f0] sm:$0xff]
    %v156 = vld [vmem:[%s1 + $0x3f8] sm:$0xff]
    %v157 = vld [vmem:[%s2] sm:$0x1]
    %v159 = vperm.slane %v157, 0
    %161 = vmatpush.msra.mxu0 %v44
    %162 = vmatpush.msra.mxu0 %v43
    %163 = vmatpush.msra.mxu0 %v42
    %164 = vmatpush.msra.mxu0 %v41
    %165 = vmatpush.msra.mxu0 %v40
    %166 = vmatpush.msra.mxu0 %v39
    %167 = vmatpush.msra.mxu0 %v38
    %168 = vmatpush.msra.mxu0 %v37
    %169 = vmatpush.msra.mxu0 %v36
    %170 = vmatpush.msra.mxu0 %v35
    %171 = vmatpush.msra.mxu0 %v34
    %172 = vmatpush.msra.mxu0 %v33
    %173 = vmatpush.msra.mxu0 %v32
    %174 = vmatpush.msra.mxu0 %v31
    %175 = vmatpush.msra.mxu0 %v30
    %176 = vmatpush.msra.mxu0 %v29
    %177 = vmatmul.f32.gmra.mxu0 %v21
    %v178 = vpop.f32.mrf.mxu0
    %v179 = vadd.f32 %v159, %v178
    %180 = vdwg.mxu0
    %181 = vmatpush.msra.mxu0 %v60
    %182 = vmatpush.msra.mxu0 %v59
    %183 = vmatpush.msra.mxu0 %v58
    %184 = vmatpush.msra.mxu0 %v57
    %185 = vmatpush.msra.mxu0 %v56
    %186 = vmatpush.msra.mxu0 %v55
    %187 = vmatpush.msra.mxu0 %v54
    %188 = vmatpush.msra.mxu0 %v53
    %189 = vmatpush.msra.mxu0 %v52
    %190 = vmatpush.msra.mxu0 %v51
    %191 = vmatpush.msra.mxu0 %v50
    %192 = vmatpush.msra.mxu0 %v49
    %193 = vmatpush.msra.mxu0 %v48
    %194 = vmatpush.msra.mxu0 %v47
    %195 = vmatpush.msra.mxu0 %v46
    %196 = vmatpush.msra.mxu0 %v45
    %197 = vmatmul.f32.gmra.mxu0 %v22
    %v198 = vpop.f32.mrf.mxu0
    %v199 = vadd.f32 %v179, %v198
    %200 = vdwg.mxu0
    %201 = vmatpush.msra.mxu0 %v76
    %202 = vmatpush.msra.mxu0 %v75
    %203 = vmatpush.msra.mxu0 %v74
    %204 = vmatpush.msra.mxu0 %v73
    %205 = vmatpush.msra.mxu0 %v72
    %206 = vmatpush.msra.mxu0 %v71
    %207 = vmatpush.msra.mxu0 %v70
    %208 = vmatpush.msra.mxu0 %v69
    %209 = vmatpush.msra.mxu0 %v68
    %210 = vmatpush.msra.mxu0 %v67
    %211 = vmatpush.msra.mxu0 %v66
    %212 = vmatpush.msra.mxu0 %v65
    %213 = vmatpush.msra.mxu0 %v64
    %214 = vmatpush.msra.mxu0 %v63
    %215 = vmatpush.msra.mxu0 %v62
    %216 = vmatpush.msra.mxu0 %v61
    %217 = vmatmul.f32.gmra.mxu0 %v23
    %v218 = vpop.f32.mrf.mxu0
    %v219 = vadd.f32 %v199, %v218
    %220 = vdwg.mxu0
    %221 = vmatpush.msra.mxu0 %v92
    %222 = vmatpush.msra.mxu0 %v91
    %223 = vmatpush.msra.mxu0 %v90
    %224 = vmatpush.msra.mxu0 %v89
    %225 = vmatpush.msra.mxu0 %v88
    %226 = vmatpush.msra.mxu0 %v87
    %227 = vmatpush.msra.mxu0 %v86
    %228 = vmatpush.msra.mxu0 %v85
    %229 = vmatpush.msra.mxu0 %v84
    %230 = vmatpush.msra.mxu0 %v83
    %231 = vmatpush.msra.mxu0 %v82
    %232 = vmatpush.msra.mxu0 %v81
    %233 = vmatpush.msra.mxu0 %v80
    %234 = vmatpush.msra.mxu0 %v79
    %235 = vmatpush.msra.mxu0 %v78
    %236 = vmatpush.msra.mxu0 %v77
    %237 = vmatmul.f32.gmra.mxu0 %v24
    %v238 = vpop.f32.mrf.mxu0
    %v239 = vadd.f32 %v219, %v238
    %240 = vdwg.mxu0
    %241 = vmatpush.msra.mxu0 %v108
    %242 = vmatpush.msra.mxu0 %v107
    %243 = vmatpush.msra.mxu0 %v106
    %244 = vmatpush.msra.mxu0 %v105
    %245 = vmatpush.msra.mxu0 %v104
    %246 = vmatpush.msra.mxu0 %v103
    %247 = vmatpush.msra.mxu0 %v102
    %248 = vmatpush.msra.mxu0 %v101
    %249 = vmatpush.msra.mxu0 %v100
    %250 = vmatpush.msra.mxu0 %v99
    %251 = vmatpush.msra.mxu0 %v98
    %252 = vmatpush.msra.mxu0 %v97
    %253 = vmatpush.msra.mxu0 %v96
    %254 = vmatpush.msra.mxu0 %v95
    %255 = vmatpush.msra.mxu0 %v94
    %256 = vmatpush.msra.mxu0 %v93
    %257 = vmatmul.f32.gmra.mxu0 %v25
    %v258 = vpop.f32.mrf.mxu0
    %v259 = vadd.f32 %v239, %v258
    %260 = vdwg.mxu0
    %261 = vmatpush.msra.mxu0 %v124
    %262 = vmatpush.msra.mxu0 %v123
    %263 = vmatpush.msra.mxu0 %v122
    %264 = vmatpush.msra.mxu0 %v121
    %265 = vmatpush.msra.mxu0 %v120
    %266 = vmatpush.msra.mxu0 %v119
    %267 = vmatpush.msra.mxu0 %v118
    %268 = vmatpush.msra.mxu0 %v117
    %269 = vmatpush.msra.mxu0 %v116
    %270 = vmatpush.msra.mxu0 %v115
    %271 = vmatpush.msra.mxu0 %v114
    %272 = vmatpush.msra.mxu0 %v113
    %273 = vmatpush.msra.mxu0 %v112
    %274 = vmatpush.msra.mxu0 %v111
    %275 = vmatpush.msra.mxu0 %v110
    %276 = vmatpush.msra.mxu0 %v109
    %277 = vmatmul.f32.gmra.mxu0 %v26
    %v278 = vpop.f32.mrf.mxu0
    %v279 = vadd.f32 %v259, %v278
    %280 = vdwg.mxu0
    %281 = vmatpush.msra.mxu0 %v140
    %282 = vmatpush.msra.mxu0 %v139
    %283 = vmatpush.msra.mxu0 %v138
    %284 = vmatpush.msra.mxu0 %v137
    %285 = vmatpush.msra.mxu0 %v136
    %286 = vmatpush.msra.mxu0 %v135
    %287 = vmatpush.msra.mxu0 %v134
    %288 = vmatpush.msra.mxu0 %v133
    %289 = vmatpush.msra.mxu0 %v132
    %290 = vmatpush.msra.mxu0 %v131
    %291 = vmatpush.msra.mxu0 %v130
    %292 = vmatpush.msra.mxu0 %v129
    %293 = vmatpush.msra.mxu0 %v128
    %294 = vmatpush.msra.mxu0 %v127
    %295 = vmatpush.msra.mxu0 %v126
    %296 = vmatpush.msra.mxu0 %v125
    %297 = vmatmul.f32.gmra.mxu0 %v27
    %v298 = vpop.f32.mrf.mxu0
    %v299 = vadd.f32 %v279, %v298
    %300 = vdwg.mxu0
    %301 = vmatpush.msra.mxu0 %v156
    %302 = vmatpush.msra.mxu0 %v155
    %303 = vmatpush.msra.mxu0 %v154
    %304 = vmatpush.msra.mxu0 %v153
    %305 = vmatpush.msra.mxu0 %v152
    %306 = vmatpush.msra.mxu0 %v151
    %307 = vmatpush.msra.mxu0 %v150
    %308 = vmatpush.msra.mxu0 %v149
    %309 = vmatpush.msra.mxu0 %v148
    %310 = vmatpush.msra.mxu0 %v147
    %311 = vmatpush.msra.mxu0 %v146
    %312 = vmatpush.msra.mxu0 %v145
    %313 = vmatpush.msra.mxu0 %v144
    %314 = vmatpush.msra.mxu0 %v143
    %315 = vmatpush.msra.mxu0 %v142
    %316 = vmatpush.msra.mxu0 %v141
    %317 = vmatmul.f32.gmra.mxu0 %v28
    %v318 = vpop.f32.mrf.mxu0
    %v319 = vadd.f32 %v299, %v318
    %320 = vdwg.mxu0
    %v321 = vmax.f32 %v319, 0.0
    %v322 = vld [vmem:[%s3] sm:$0xff]
    %v323 = vld [vmem:[%s3 + $0x8] sm:$0xff]
    %v324 = vld [vmem:[%s3 + $0x10] sm:$0xff]
    %v325 = vld [vmem:[%s3 + $0x18] sm:$0xff]
    %v326 = vld [vmem:[%s4] sm:$0x1]
    %v328 = vperm.slane %v326, 0
    %vm330 = vcmask 261120
    %v332 = vsel %vm330, %v321, 0
    %334 = vmatpush.msra.mxu0 0.0
    %335 = vmatpush.msra.mxu0 0.0
    %336 = vmatpush.msra.mxu0 0.0
    %337 = vmatpush.msra.mxu0 0.0
    %338 = vmatpush.msra.mxu0 0.0
    %339 = vmatpush.msra.mxu0 0.0
    %340 = vmatpush.msra.mxu0 0.0
    %341 = vmatpush.msra.mxu0 0.0
    %342 = vmatpush.msra.mxu0 0.0
    %343 = vmatpush.msra.mxu0 0.0
    %344 = vmatpush.msra.mxu0 0.0
    %345 = vmatpush.msra.mxu0 0.0
    %346 = vmatpush.msra.mxu0 %v325
    %347 = vmatpush.msra.mxu0 %v324
    %348 = vmatpush.msra.mxu0 %v323
    %349 = vmatpush.msra.mxu0 %v322
    %350 = vmatmul.f32.gmra.mxu0 %v332
    %v351 = vpop.f32.mrf.mxu0
    %v352 = vadd.f32 %v328, %v351
    %353 = vdwg.mxu0
    %v354 = vmax.f32 %v352, 0.0
    %vm355 = vcmp.ne.f32.partialorder %v352, %v352
    %v356 = vadd.f32 %v352, 0.0
    %v357 = vand.u32 2147483647, %v352
    %v358 = vsub.f32 0.0, %v357
    %v359 = vmul.f32 %v358, 1.442695
    %v360 = vpow.pop %v359
    %v361 = vadd.f32 %v360, 1.0
    %v362 = vlog2.pop %v361
    %v363 = vmul.f32 %v362, 0.6931472
    %v364 = vmul.f32 -0.5, %v360
    %v365 = vadd.f32 %v364, 1.0
    %v366 = vmul.f32 %v365, %v360
    %v367 = vand.u32 2147483647, %v360
    %vm368 = vcmp.lt.f32.partialorder %v367, 0.0004427343
    %v369 = vsel %vm368, %v366, %v363
    %v370 = vadd.f32 %v354, %v369
    %v371 = vsel %vm355, %v356, %v370
    %v372 = vadd.f32 %v371, 1e-05
    %vm373 = vcmask 64512
    %v374 = vsel %vm373, %v352, %v372
    %vm375 = vcmask 130048
    %376 = vst.msk [vmem:[#allocation2] sm:$0xff] %vm375, %v374
    // Predicated region
    $region22: #{tpu_custom_call.1} parent=1 // pred_check
      _
    $region23: #{tpu_custom_call.1} parent=1 // pred_check_branch
      %378 = sbr.rel (0) target = $region25
    $region24: #{tpu_custom_call.1} parent=1 // pred_region
      %380 = vsyncadd [#allocation3], 0
      %s382 = sshll.u32 [#allocation2], 4
      %s383 = int_to_ptr.vmem [resolvable:$true] %s382
      %s384 = sshll.u32 %s5, 4
      %s385 = int_to_ptr.hbm [resolvable:$true] %s384
      %387 = dma.vmem_to_hbm [thread:$0]  %s383, 128, %s385, [#allocation3]
    $region25: #{tpu_custom_call.1} parent=1 // pred_fallthru
      _
    // Predicated region
    $region26: #{tpu_custom_call.1} parent=1 // pred_check
      _
    $region27: #{tpu_custom_call.1} parent=1 // pred_check_branch
      %389 = sbr.rel (0) target = $region29
    $region28: #{tpu_custom_call.1} parent=1 // pred_region
      %391 = dma.done [#allocation3], 128
    $region29: #{tpu_custom_call.1} parent=1 // pred_fallthru
      _
    %392 = vsyncpa [#allocation3], 1

</llo_original>
